<compile_context>
chip_gen: v7x
topology: tpu7x:2x2x1
jax: 0.10.0
libtpu: 0.0.40
codegen_flags: <defaults>
</compile_context>

<pallas_src>
import functools

import numpy as np
import jax
import jax.numpy as jnp
from jax.experimental import pallas as pl
from jax.experimental.pallas import tpu as pltpu


# ----------------------------------------------------------------------------- weights table
def _make_class_weights(samples_per_class, beta):
    samples_per_class = np.asarray(samples_per_class, dtype=np.float64)
    effective_num = 1.0 - np.power(beta, samples_per_class)
    weights = (1.0 - beta) / effective_num
    constant_sum = len(samples_per_class)
    weights = (weights / np.sum(weights) * constant_sum).astype(np.float32)
    return jnp.asarray(weights)


# ----------------------------------------------------------------------------- tiling
# ~8 MiB per x tile: with the default 2-deep pipeline that is ~16 MiB of VMEM for x
# (plus tiny y/w/output tiles).  We raise vmem_limit_bytes to 32 MiB so this also
# fits on v5e (whose scoped default is only 16 MiB); it is already within the
# v6e/v7x defaults and far under v7x's 64 MiB physical VMEM.
_TARGET_TILE_BYTES = 8 * 1024 * 1024
_VMEM_LIMIT_BYTES = 32 * 1024 * 1024


def _round_up(n, m):
    return ((n + m - 1) // m) * m


def _pick_tile_rows(batch, num_classes, itemsize):
    rows = _TARGET_TILE_BYTES // max(1, num_classes * itemsize)
    rows = max(8, (rows // 8) * 8)                    # sublane multiple
    # Keep num_tiles >= 2 whenever the batch allows it, so the 'parallel' batch axis
    # actually shards across both TensorCores on v7x (single-TC v5e/v6e unaffected).
    half = max(8, _round_up((batch + 1) // 2, 8))
    rows = min(rows, half)
    rows = min(rows, _round_up(batch, 8))             # never bigger than the batch
    return rows


# ----------------------------------------------------------------------------- kernel
def _cb_focal_kernel(gamma, batch, tile_rows, ragged, x_ref, y_ref, w_ref, out_ref):
    x = x_ref[...].astype(jnp.float32)          # (TB, Cp) logits (f32 compute)
    y = y_ref[...]                              # (TB, 1) i32 labels
    w = w_ref[...].astype(jnp.float32)          # (TB, 1) per-sample class weight
    tb, c = x.shape

    valid = None
    if ragged:
        # Ragged last block: rows >= batch hold garbage (x never padded in HBM).
        # Select-mask BEFORE the exp/log chain so garbage can't generate Inf/NaN.
        row = (pl.program_id(0) * tile_rows
               + jax.lax.broadcasted_iota(jnp.int32, (tb, 1), 0))
        valid = row < batch
        x = jnp.where(valid, x, 0.0)

    # one-hot as a boolean lane-iota compare feeding a select; never a f32 temp
    col = jax.lax.broadcasted_iota(jnp.int32, (tb, c), 1)
    xt = jnp.where(col == y, x, 0.0)            # t * x

    # Shared stable pieces (VALU-lean):
    #   r = max(x, 0), l = log1p(exp(-|x|)), s = r + l
    #   bce          = r - t*x + l            = s - xt
    #   softplus(-x) = max(-x, 0) + l = r-x+l = s - x
    #   modulator    = exp(-gamma*(xt + s - x)) = exp(gamma*(x - xt - s))
    e = jnp.exp(-jnp.abs(x))                    # EUP
    l = jnp.log1p(e)                            # EUP
    s = jnp.maximum(x, 0.0) + l
    bce = s - xt
    modulator = jnp.exp(gamma * (x - xt - s))   # EUP

    weighted = w * (modulator * bce)            # (TB, Cp), w broadcasts over classes
    if ragged:
        # select (not multiply) so garbage y/w in the ragged block can't inject NaN
        weighted = jnp.where(valid, weighted, 0.0)

    # Sublane-only reduction -> lane-dense (1, Cp) partial for this tile.
    # The tiny cross-lane finish and /B happen outside the kernel.
    # NOTE(v6e): the elementwise chain + sublane sum fuses per-vreg (no (TB, Cp)
    # f32 temporaries in VMEM); if TB is ever enlarged past this and spills appear,
    # split the tile compute with a short fori_loop over row chunks.
    out_ref[...] = jnp.sum(weighted, axis=0, keepdims=True)[None]


# ----------------------------------------------------------------------------- wrapper
def class_balanced_focal_loss(x, y, class_weights, gamma=0.5):
    """x: (B, C) f32/bf16 logits, y: (B,) int labels, class_weights: (C,) f32.

    On HBM-bound v5e, pass bf16 logits (the kernel upcasts internally) to halve
    the dominant HBM traffic; near-neutral on compute-bound v7x.
    """
    B, C = x.shape

    # glue (tiny): per-sample class-weight gather (index_select) stays in XLA
    w = class_weights[y].reshape(B, 1).astype(jnp.float32)
    y2 = y.reshape(B, 1).astype(jnp.int32)

    # Lane-dense class axis: one-time pad of C to a 128 multiple, using a huge
    # negative logit so padded classes contribute exactly 0 (bce = modulator = 0).
    # No-op branch when C is already a multiple of 128 (the common case).
    xf = x
    C_pad = _round_up(C, 128)
    if C_pad != C:
        xf = jnp.pad(xf, ((0, 0), (0, C_pad - C)), constant_values=-1e30)

    TB = _pick_tile_rows(B, C_pad, xf.dtype.itemsize)
    num_tiles = (B + TB - 1) // TB
    ragged = (B % TB) != 0                      # last block masked in-kernel, no x pad

    kernel = functools.partial(_cb_focal_kernel, float(gamma), B, TB, ragged)
    cost = pl.CostEstimate(
        flops=12 * B * C_pad,
        transcendentals=3 * B * C_pad,
        bytes_accessed=(B * C_pad * xf.dtype.itemsize   # logits
                        + B * (4 + 4)                   # labels + weights
                        + num_tiles * C_pad * 4),       # per-tile partials
    )

    partials = pl.pallas_call(
        kernel,
        out_shape=jax.ShapeDtypeStruct((num_tiles, 1, C_pad), jnp.float32),
        grid=(num_tiles,),
        in_specs=[
            pl.BlockSpec((TB, C_pad), lambda i: (i, 0)),   # x tile
            pl.BlockSpec((TB, 1), lambda i: (i, 0)),       # y tile
            pl.BlockSpec((TB, 1), lambda i: (i, 0)),       # w tile
        ],
        out_specs=pl.BlockSpec((1, 1, C_pad), lambda i: (i, 0, 0)),
        compiler_params=pltpu.CompilerParams(
            dimension_semantics=("parallel",),             # no carried accumulator
            vmem_limit_bytes=_VMEM_LIMIT_BYTES,            # v5e default is only 16 MiB
        ),
        cost_estimate=cost,
    )(xf, y2, w)

    # Denominator sum(one_hot) == B for in-range labels; use the compile-time
    # constant (out-of-range labels would differ from the PyTorch reference).
    return jnp.sum(partials) / jnp.float32(B)


# ----------------------------------------------------------------------------- reference
def _jax_reference(x, y, class_weights, gamma):
    B, C = x.shape
    t = jax.nn.one_hot(y, C, dtype=jnp.float32)
    w = class_weights[y].reshape(B, 1)
    x = x.astype(jnp.float32)
    bce = jnp.maximum(x, 0.0) - x * t + jnp.log1p(jnp.exp(-jnp.abs(x)))
    sp_negx = jnp.maximum(-x, 0.0) + jnp.log1p(jnp.exp(-jnp.abs(x)))
    modulator = jnp.exp(-gamma * t * x - gamma * sp_negx)
    return jnp.sum(w * modulator * bce) / jnp.sum(t)


if __name__ == "__main__":
    B, C = 8, 128            # small synthetic shapes: batch=8, num_classes=128
    beta, gamma = 0.9999, 0.5

    # deterministic class-frequency table (module __init__ / update semantics)
    samples_per_class = np.arange(1, C + 1, dtype=np.int64) * 3
    class_weights = _make_class_weights(samples_per_class, beta)

    key = jax.random.PRNGKey(0)
    kx, ky = jax.random.split(key)
    x = jax.random.normal(kx, (B, C), dtype=jnp.float32)
    y = jax.random.randint(ky, (B,), 0, C, dtype=jnp.int32)

    loss = class_balanced_focal_loss(x, y, class_weights, gamma=gamma)
    loss = jax.block_until_ready(loss)

    ref = _jax_reference(x, y, class_weights, gamma)
    np.testing.assert_allclose(np.asarray(loss), np.asarray(ref), rtol=1e-5, atol=1e-5)

    print("KERNEL_OK")
</pallas_src>

<mosaic_0001>
module attributes {stable_mosaic.version = 11 : i64} {
  func.func @_cb_focal_kernel(%arg0: i32, %arg1: memref<8x128xf32, #tpu.memory_space<vmem>>, %arg2: memref<8x1xi32, #tpu.memory_space<vmem>>, %arg3: memref<8x1xf32, #tpu.memory_space<vmem>>, %arg4: memref<1x1x128xf32, #tpu.memory_space<vmem>>) attributes {dimension_semantics = [#tpu.dimension_semantics<parallel>], iteration_bounds = array<i64: 1>, scalar_prefetch = 0 : i64, scratch_operands = 0 : i64, tpu.core_type = #tpu.core_type<tc>, window_params = [{transform_indices = @transform_0, window_bounds = array<i64: 8, 128>}, {transform_indices = @transform_1, window_bounds = array<i64: 8, 1>}, {transform_indices = @transform_2, window_bounds = array<i64: 8, 1>}, {transform_indices = @transform_3, window_bounds = array<i64: 1, 1, 128>}]} {
    %c0 = arith.constant 0 : index
    %c0_0 = arith.constant 0 : index
    %0 = vector.load %arg1[%c0, %c0_0] : memref<8x128xf32, #tpu.memory_space<vmem>>, vector<8x128xf32>
    %c0_1 = arith.constant 0 : index
    %c0_2 = arith.constant 0 : index
    %1 = vector.load %arg2[%c0_1, %c0_2] : memref<8x1xi32, #tpu.memory_space<vmem>>, vector<8x1xi32>
    %c0_3 = arith.constant 0 : index
    %c0_4 = arith.constant 0 : index
    %2 = vector.load %arg3[%c0_3, %c0_4] : memref<8x1xf32, #tpu.memory_space<vmem>>, vector<8x1xf32>
    %3 = tpu.iota {dimensions = array<i32: 1>} : vector<8x128xi32>
    %4 = vector.broadcast %1 : vector<8x1xi32> to vector<8x128xi32>
    %5 = arith.cmpi eq, %3, %4 : vector<8x128xi32>
    %cst = arith.constant 0.000000e+00 : f32
    %6 = vector.broadcast %cst : f32 to vector<8x128xf32>
    %7 = arith.select %5, %0, %6 : vector<8x128xi1>, vector<8x128xf32>
    %8 = math.absf %0 : vector<8x128xf32>
    %cst_5 = arith.constant 0.000000e+00 : f32
    %9 = vector.broadcast %cst_5 : f32 to vector<8x128xf32>
    %10 = arith.subf %9, %8 : vector<8x128xf32>
    %11 = math.exp %10 : vector<8x128xf32>
    %12 = math.log1p %11 : vector<8x128xf32>
    %cst_6 = arith.constant 0.000000e+00 : f32
    %13 = vector.broadcast %cst_6 : f32 to vector<8x128xf32>
    %14 = arith.maximumf %0, %13 : vector<8x128xf32>
    %15 = arith.addf %14, %12 : vector<8x128xf32>
    %16 = arith.subf %15, %7 : vector<8x128xf32>
    %17 = arith.subf %0, %7 : vector<8x128xf32>
    %18 = arith.subf %17, %15 : vector<8x128xf32>
    %cst_7 = arith.constant 5.000000e-01 : f32
    %19 = vector.broadcast %cst_7 : f32 to vector<8x128xf32>
    %20 = arith.mulf %19, %18 : vector<8x128xf32>
    %21 = math.exp %20 : vector<8x128xf32>
    %22 = arith.mulf %21, %16 : vector<8x128xf32>
    %23 = vector.broadcast %2 : vector<8x1xf32> to vector<8x128xf32>
    %24 = arith.mulf %23, %22 : vector<8x128xf32>
    %cst_8 = arith.constant dense<0.000000e+00> : vector<128xf32>
    %25 = vector.multi_reduction <add>, %24, %cst_8 [0] : vector<8x128xf32> to vector<128xf32>
    %26 = vector.shape_cast %25 : vector<128xf32> to vector<1x128xf32>
    %27 = vector.shape_cast %26 : vector<1x128xf32> to vector<1x1x128xf32>
    %c0_9 = arith.constant 0 : index
    %c0_10 = arith.constant 0 : index
    %c0_11 = arith.constant 0 : index
    %28 = vector.load %arg4[%c0_9, %c0_10, %c0_11] : memref<1x1x128xf32, #tpu.memory_space<vmem>>, vector<1x1x128xf32>
    tpu.vector_store %arg4[%c0_9, %c0_10, %c0_11], %27 {strides = array<i32>} : memref<1x1x128xf32, #tpu.memory_space<vmem>>, vector<1x1x128xf32>,
    return
  }
  func.func @transform_0(%arg0: i32) -> (i32, i32) {
    %c0_i32 = arith.constant 0 : i32
    %c0_i32_0 = arith.constant 0 : i32
    return %arg0, %c0_i32 : i32, i32
  }
  func.func @transform_1(%arg0: i32) -> (i32, i32) {
    %c0_i32 = arith.constant 0 : i32
    %c0_i32_0 = arith.constant 0 : i32
    return %arg0, %c0_i32 : i32, i32
  }
  func.func @transform_2(%arg0: i32) -> (i32, i32) {
    %c0_i32 = arith.constant 0 : i32
    %c0_i32_0 = arith.constant 0 : i32
    return %arg0, %c0_i32 : i32, i32
  }
  func.func @transform_3(%arg0: i32) -> (i32, i32, i32) {
    %c0_i32 = arith.constant 0 : i32
    %c0_i32_0 = arith.constant 0 : i32
    %c0_i32_1 = arith.constant 0 : i32
    return %arg0, %c0_i32, %c0_i32_0 : i32, i32, i32
  }
}

</mosaic_0001>

<llo_original>
// kernel: tpu_custom_call.1
$region0: #{tpu_custom_call.1}
  #allocation0 [shape = 'u32[]', space=smem, size = 0x4, offset = 0x4, fixed_abs, tag = 'smem constant byte address 0x4 - core index']
  #allocation1 [shape = 'u32[144,128]{1,0:T(1,128)}', space=vmem, size = 0x12000, scoped, tag = 'internal scratch']
  %s0 = inlined_call_operand.vmem [shape: f32[8,128], index: 0, kind: input, shape index: {}]
  %s1 = inlined_call_operand.vmem [shape: s32[8,1], index: 1, kind: input, shape index: {}]
  %s2 = inlined_call_operand.vmem [shape: f32[8,1], index: 2, kind: input, shape index: {}]
  %s3 = inlined_call_operand.hbm [shape: f32[1,1,128], index: 3, kind: output, shape index: {}]
  %s4 = sld [smem:[#allocation0]]
  $region22: #{tpu_custom_call.1} parent=0
    _
  %s6 = ssub.s32 1, %s4
  %s7 = scalar_select 0, %s6, %s4
  $region1: #{tpu_custom_call.1} parent=0
    #allocation2 [shape = 'u8[512]{0}', space=vmem, size = 0x400, scoped, tag = 'output window, operand 0, single buffered']
    #allocation3 [shape = 's32[1]{0}', space=sflag, size = 0x4, scoped, tag = 'scoped memory for tpu_custom_call.1']
    %8 = vsyncpa [#allocation3], 0
    // Predicated region
    $region2: #{tpu_custom_call.1} parent=1 // pred_check
      _
    $region3: #{tpu_custom_call.1} parent=1 // pred_check_branch
      %10 = sbr.rel (0) target = $region5
    $region4: #{tpu_custom_call.1} parent=1 // pred_region
      _
    $region5: #{tpu_custom_call.1} parent=1 // pred_fallthru
      _
    // Predicated region
    $region6: #{tpu_custom_call.1} parent=1 // pred_check
      _
    $region7: #{tpu_custom_call.1} parent=1 // pred_check_branch
      %12 = sbr.rel (0) target = $region9
    $region8: #{tpu_custom_call.1} parent=1 // pred_region
      _
    $region9: #{tpu_custom_call.1} parent=1 // pred_fallthru
      _
    // Predicated region
    $region10: #{tpu_custom_call.1} parent=1 // pred_check
      _
    $region11: #{tpu_custom_call.1} parent=1 // pred_check_branch
      %14 = sbr.rel (0) target = $region13
    $region12: #{tpu_custom_call.1} parent=1 // pred_region
      _
    $region13: #{tpu_custom_call.1} parent=1 // pred_fallthru
      _
    %v15 = vld [vmem:[%s0] sm:$0xff]
    %v16 = vld [vmem:[%s1] sm:$0xff]
    %v17 = vld [vmem:[%s2] sm:$0xff]
    %v18 = vlaneseq
    %v19 = vand.u32 %v18, 127
    %20 = vset.pattern.permute.xlu0 0
    %21 = vperm.xlu0 %20, %v16
    %v22 = vpop.permute.xlu0 %21
    %vm23 = vcmp.eq.s32.totalorder %v19, %v22
    %v24 = vsel %vm23, %v15, 0.0
    %v25 = vand.u32 2147483647, %v15
    %v26 = vsub.f32 0.0, %v25
    %v27 = vmul.f32 %v26, 1.442695
    %v28 = vpow.pop %v27
    %v29 = vadd.f32 %v28, 1.0
    %v30 = vlog2.pop %v29
    %v31 = vmul.f32 %v30, 0.6931472
    %v32 = vmul.f32 -0.5, %v28
    %v33 = vadd.f32 %v32, 1.0
    %v34 = vmul.f32 %v33, %v28
    %v35 = vand.u32 2147483647, %v28
    %vm36 = vcmp.lt.f32.partialorder %v35, 0.0004427343
    %v37 = vsel %vm36, %v34, %v31
    %v38 = vmax.f32 %v15, 0.0
    %v39 = vadd.f32 %v38, %v37
    %v40 = vsub.f32 %v39, %v24
    %v41 = vsub.f32 %v15, %v24
    %v42 = vsub.f32 %v41, %v39
    %v43 = vmul.f32 %v42, 0.5
    %v44 = vmul.f32 %v43, 1.442695
    %v45 = vpow.pop %v44
    %v46 = vmul.f32 %v45, %v40
    %48 = vset.pattern.permute.xlu0 0
    %49 = vperm.xlu0 %48, %v17
    %v50 = vpop.permute.xlu0 %49
    %v52 = vmul.f32 %v50, %v46
    %v53 = vrot.slane %v52, 4
    %v54 = vadd.f32 %v52, %v53
    %v55 = vrot.slane %v54, 2
    %v56 = vadd.f32 %v54, %v55
    %v57 = vrot.slane %v56, 1
    %v58 = vadd.f32 %v56, %v57
    %59 = vst [vmem:[#allocation2] sm:$0x1] %v58
    // Predicated region
    $region14: #{tpu_custom_call.1} parent=1 // pred_check
      _
    $region15: #{tpu_custom_call.1} parent=1 // pred_check_branch
      %61 = sbr.rel (0) target = $region17
    $region16: #{tpu_custom_call.1} parent=1 // pred_region
      %s63 = ssub.s32 16, 16
      %64 = vsyncadd [#allocation3], %s63
      %s66 = sshll.u32 [#allocation2], 4
      %s67 = int_to_ptr.vmem [resolvable:$true] %s66
      %69 = dma.vmem_to_hbm [thread:$0]  %s67, 16, %s3, [#allocation3]
    $region17: #{tpu_custom_call.1} parent=1 // pred_fallthru
      _
    // Predicated region
    $region18: #{tpu_custom_call.1} parent=1 // pred_check
      _
    $region19: #{tpu_custom_call.1} parent=1 // pred_check_branch
      %71 = sbr.rel (0) target = $region21
    $region20: #{tpu_custom_call.1} parent=1 // pred_region
      %72 = dma.done [#allocation3], 16
    $region21: #{tpu_custom_call.1} parent=1 // pred_fallthru
      _
    %73 = vsyncpa [#allocation3], 1

</llo_original>
